<compile_context>
chip_gen: v5e
topology: v5e:2x2
jax: 0.10.0
libtpu: 0.0.40
codegen_flags: <defaults>
</compile_context>

<pallas_src>
import functools

import jax
import jax.numpy as jnp
from jax.experimental import pallas as pl
from jax.experimental.pallas import tpu as pltpu

HIDDEN_SIZE = 32   # x last dim == Linear in_features implied by the forward
NUM_HEADS = 4      # qkv_proj out_features = 3 * NUM_HEADS
DROPOUT_P = 1.0    # module-level constant (F.dropout, training semantics)


def _attention_body(x_ref, wq_ref, wk_ref, wv_ref, bq_ref, bk_ref, bv_ref, *, scale):
    """Shared math: qkv projection + scaled softmax. Returns (attn, v)."""
    B, S, H = x_ref.shape
    nh = wq_ref.shape[1]

    # Single lane-aligned (B*S, H) x (H, nh) MXU matmul per q/k/v.
    x2d = x_ref[...].astype(jnp.float32).reshape(B * S, H)
    q = (jnp.dot(x2d, wq_ref[...].astype(jnp.float32),
                 preferred_element_type=jnp.float32) + bq_ref[...]).reshape(B, S, nh)
    k = (jnp.dot(x2d, wk_ref[...].astype(jnp.float32),
                 preferred_element_type=jnp.float32) + bk_ref[...]).reshape(B, S, nh)
    v = (jnp.dot(x2d, wv_ref[...].astype(jnp.float32),
                 preferred_element_type=jnp.float32) + bv_ref[...]).reshape(B, S, nh)

    # Batched contraction on the shared head dim -- no explicit k transpose.
    scores = jnp.einsum("bqd,bkd->bqk", q, k,
                        preferred_element_type=jnp.float32) * scale

    # softmax over last dim (kept in f32 on every generation).
    scores = scores - jnp.max(scores, axis=-1, keepdims=True)
    e = jnp.exp(scores)
    attn = e / jnp.sum(e, axis=-1, keepdims=True)
    return attn, v


def _attn_kernel(x_ref, wq_ref, wk_ref, wv_ref, bq_ref, bk_ref, bv_ref, o_ref, *,
                 scale):
    attn, v = _attention_body(x_ref, wq_ref, wk_ref, wv_ref,
                              bq_ref, bk_ref, bv_ref, scale=scale)
    out = jnp.einsum("bqk,bkd->bqd", attn, v, preferred_element_type=jnp.float32)
    o_ref[...] = out.astype(o_ref.dtype)


def _attn_dropout_kernel(seed_ref, x_ref, wq_ref, wk_ref, wv_ref,
                         bq_ref, bk_ref, bv_ref, o_ref, *, scale, dropout_p):
    # Only instantiated when 0 < dropout_p < 1.
    attn, v = _attention_body(x_ref, wq_ref, wk_ref, wv_ref,
                              bq_ref, bk_ref, bv_ref, scale=scale)
    # Inverted dropout (PyTorch F.dropout training semantics); RNG stream
    # differs from PyTorch's, which is expected.
    pltpu.prng_seed(seed_ref[0])
    bits = pltpu.bitcast(pltpu.prng_random_bits(attn.shape), jnp.uint32)
    u = (bits >> 8).astype(jnp.float32) * (1.0 / (1 << 24))   # uniform [0, 1)
    keep = (u >= dropout_p).astype(jnp.float32)
    attn = attn * keep * (1.0 / (1.0 - dropout_p))
    out = jnp.einsum("bqk,bkd->bqd", attn, v, preferred_element_type=jnp.float32)
    o_ref[...] = out.astype(o_ref.dtype)


def model_forward(x, w, bias, *, dropout_p, seed=0):
    """x: (B, S, H) f32; w: (H, 3*nh); bias: (3*nh,). Returns (B, S, nh)."""
    B, S, H = x.shape
    nh = w.shape[1] // 3
    scale = float(H) ** (-0.5)
    dropout_p = float(dropout_p)

    # F.dropout(training) with p >= 1 zeroes everything -> skip the kernel launch.
    if dropout_p >= 1.0:
        return jnp.zeros((B, S, nh), x.dtype)

    # Split fused qkv weight/bias in the wrapper so the kernel never lane-slices
    # a (S, 3*nh) tile (pure trace-time layout plumbing).
    wq, wk, wv = w[:, :nh], w[:, nh:2 * nh], w[:, 2 * nh:]
    bq = bias[:nh].reshape(1, nh)
    bk = bias[nh:2 * nh].reshape(1, nh)
    bv = bias[2 * nh:].reshape(1, nh)

    vmem = lambda: pl.BlockSpec(memory_space=pltpu.MemorySpace.VMEM)
    out_shape = jax.ShapeDtypeStruct((B, S, nh), x.dtype)

    if dropout_p == 0.0:
        # No dropout: no PRNG, no scalar seed plumbing, single grid step.
        kernel = functools.partial(_attn_kernel, scale=scale)
        return pl.pallas_call(
            kernel,
            out_shape=out_shape,
            in_specs=[vmem() for _ in range(7)],
            out_specs=vmem(),
        )(x, wq, wk, wv, bq, bk, bv)

    # 0 < p < 1: seed lives in SMEM; dropout applied between softmax and P@V.
    kernel = functools.partial(_attn_dropout_kernel, scale=scale, dropout_p=dropout_p)
    seed_arr = jnp.array([seed], dtype=jnp.int32)
    return pl.pallas_call(
        kernel,
        out_shape=out_shape,
        in_specs=[pl.BlockSpec(memory_space=pltpu.MemorySpace.SMEM)]
                 + [vmem() for _ in range(7)],
        out_specs=vmem(),
    )(seed_arr, x, wq, wk, wv, bq, bk, bv)


def ref_forward(x, w, bias):
    """Pure-JAX reference with dropout disabled (p=0)."""
    qkv = jnp.einsum("bsh,ho->bso", x, w) + bias
    h = w.shape[1] // 3
    q, k, v = qkv[..., :h], qkv[..., h:2 * h], qkv[..., 2 * h:]
    scores = jnp.einsum("bqh,bkh->bqk", q, k) * (x.shape[-1] ** -0.5)
    p = jax.nn.softmax(scores, axis=-1)
    return jnp.einsum("bqk,bkh->bqh", p, v)


if __name__ == "__main__":
    key = jax.random.PRNGKey(0)
    kx, kw, kb = jax.random.split(key, 3)

    B, S = 4, 16   # matches the spec's x1 = torch.randn(4, 16, 32)
    x = jax.random.normal(kx, (B, S, HIDDEN_SIZE), jnp.float32)

    # Deterministic Linear(hidden, 3*heads) init (uniform, PyTorch-style bound).
    bound = 1.0 / (HIDDEN_SIZE ** 0.5)
    w = jax.random.uniform(kw, (HIDDEN_SIZE, 3 * NUM_HEADS), jnp.float32, -bound, bound)
    bias = jax.random.uniform(kb, (3 * NUM_HEADS,), jnp.float32, -bound, bound)

    # Sanity check of the attention math (real Pallas kernel, dropout disabled).
    out_nodrop = model_forward(x, w, bias, dropout_p=0.0)
    jax.block_until_ready(out_nodrop)
    ref = ref_forward(x, w, bias)
    assert jnp.allclose(out_nodrop, ref, atol=1e-5, rtol=1e-5), "mismatch vs reference"

    # Configured module path: dropout_p = 1 (training F.dropout) -> all zeros,
    # short-circuited in the wrapper with no kernel launch.
    out = model_forward(x, w, bias, dropout_p=DROPOUT_P, seed=0)
    jax.block_until_ready(out)
    assert out.shape == (B, S, NUM_HEADS)
    assert jnp.allclose(out, jnp.zeros_like(out))

    print("KERNEL_OK")
</pallas_src>

<mosaic_0001>
module attributes {stable_mosaic.version = 11 : i64} {
  func.func @_attn_kernel(%arg0: memref<4x16x32xf32, #tpu.memory_space<vmem>>, %arg1: memref<32x4xf32, #tpu.memory_space<vmem>>, %arg2: memref<32x4xf32, #tpu.memory_space<vmem>>, %arg3: memref<32x4xf32, #tpu.memory_space<vmem>>, %arg4: memref<1x4xf32, #tpu.memory_space<vmem>>, %arg5: memref<1x4xf32, #tpu.memory_space<vmem>>, %arg6: memref<1x4xf32, #tpu.memory_space<vmem>>, %arg7: memref<4x16x4xf32, #tpu.memory_space<vmem>>) attributes {dimension_semantics = [], scalar_prefetch = 0 : i64, scratch_operands = 0 : i64, tpu.core_type = #tpu.core_type<tc>} {
    %c0 = arith.constant 0 : index
    %c0_0 = arith.constant 0 : index
    %c0_1 = arith.constant 0 : index
    %0 = vector.load %arg0[%c0, %c0_0, %c0_1] : memref<4x16x32xf32, #tpu.memory_space<vmem>>, vector<4x16x32xf32>
    %1 = vector.shape_cast %0 : vector<4x16x32xf32> to vector<64x32xf32>
    %c0_2 = arith.constant 0 : index
    %c0_3 = arith.constant 0 : index
    %2 = vector.load %arg1[%c0_2, %c0_3] : memref<32x4xf32, #tpu.memory_space<vmem>>, vector<32x4xf32>
    %cst = arith.constant dense<0.000000e+00> : vector<64x4xf32>
    %3 = tpu.matmul %1, %2, %cst {dimension_numbers = #tpu.dot_dimension_numbers<[1], [0], [0], [1], [0, 0, 1, 1], [], []>} : vector<64x32xf32>, vector<32x4xf32>, vector<64x4xf32> -> vector<64x4xf32>
    %c0_4 = arith.constant 0 : index
    %c0_5 = arith.constant 0 : index
    %4 = vector.load %arg4[%c0_4, %c0_5] : memref<1x4xf32, #tpu.memory_space<vmem>>, vector<1x4xf32>
    %5 = vector.broadcast %4 : vector<1x4xf32> to vector<64x4xf32>
    %6 = arith.addf %3, %5 : vector<64x4xf32>
    %7 = vector.shape_cast %6 : vector<64x4xf32> to vector<4x16x4xf32>
    %c0_6 = arith.constant 0 : index
    %c0_7 = arith.constant 0 : index
    %8 = vector.load %arg2[%c0_6, %c0_7] : memref<32x4xf32, #tpu.memory_space<vmem>>, vector<32x4xf32>
    %cst_8 = arith.constant dense<0.000000e+00> : vector<64x4xf32>
    %9 = tpu.matmul %1, %8, %cst_8 {dimension_numbers = #tpu.dot_dimension_numbers<[1], [0], [0], [1], [0, 0, 1, 1], [], []>} : vector<64x32xf32>, vector<32x4xf32>, vector<64x4xf32> -> vector<64x4xf32>
    %c0_9 = arith.constant 0 : index
    %c0_10 = arith.constant 0 : index
    %10 = vector.load %arg5[%c0_9, %c0_10] : memref<1x4xf32, #tpu.memory_space<vmem>>, vector<1x4xf32>
    %11 = vector.broadcast %10 : vector<1x4xf32> to vector<64x4xf32>
    %12 = arith.addf %9, %11 : vector<64x4xf32>
    %13 = vector.shape_cast %12 : vector<64x4xf32> to vector<4x16x4xf32>
    %c0_11 = arith.constant 0 : index
    %c0_12 = arith.constant 0 : index
    %14 = vector.load %arg3[%c0_11, %c0_12] : memref<32x4xf32, #tpu.memory_space<vmem>>, vector<32x4xf32>
    %cst_13 = arith.constant dense<0.000000e+00> : vector<64x4xf32>
    %15 = tpu.matmul %1, %14, %cst_13 {dimension_numbers = #tpu.dot_dimension_numbers<[1], [0], [0], [1], [0, 0, 1, 1], [], []>} : vector<64x32xf32>, vector<32x4xf32>, vector<64x4xf32> -> vector<64x4xf32>
    %c0_14 = arith.constant 0 : index
    %c0_15 = arith.constant 0 : index
    %16 = vector.load %arg6[%c0_14, %c0_15] : memref<1x4xf32, #tpu.memory_space<vmem>>, vector<1x4xf32>
    %17 = vector.broadcast %16 : vector<1x4xf32> to vector<64x4xf32>
    %18 = arith.addf %15, %17 : vector<64x4xf32>
    %19 = vector.shape_cast %18 : vector<64x4xf32> to vector<4x16x4xf32>
    "tpu.trace_start"() <{level = 10 : i32, message = "bqd,bkd->bqk"}> : () -> ()
    %cst_16 = arith.constant dense<0.000000e+00> : vector<4x16x16xf32>
    %20 = tpu.matmul %7, %13, %cst_16 {dimension_numbers = #tpu.dot_dimension_numbers<[2], [2], [1], [1], [0, 0, 0, 1, 1, 1], [0], [0]>} : vector<4x16x4xf32>, vector<4x16x4xf32>, vector<4x16x16xf32> -> vector<4x16x16xf32>
    "tpu.trace_stop"() : () -> ()
    %cst_17 = arith.constant 0.176776692 : f32
    %21 = vector.broadcast %cst_17 : f32 to vector<4x16x16xf32>
    %22 = arith.mulf %20, %21 : vector<4x16x16xf32>
    %cst_18 = arith.constant dense<0xFF800000> : vector<4x16xf32>
    %23 = vector.multi_reduction <maximumf>, %22, %cst_18 [2] : vector<4x16x16xf32> to vector<4x16xf32>
    %24 = vector.shape_cast %23 : vector<4x16xf32> to vector<4x16x1xf32>
    %25 = vector.broadcast %24 : vector<4x16x1xf32> to vector<4x16x16xf32>
    %26 = arith.subf %22, %25 : vector<4x16x16xf32>
    %27 = math.exp %26 : vector<4x16x16xf32>
    %cst_19 = arith.constant dense<0.000000e+00> : vector<4x16xf32>
    %28 = vector.multi_reduction <add>, %27, %cst_19 [2] : vector<4x16x16xf32> to vector<4x16xf32>
    %29 = vector.shape_cast %28 : vector<4x16xf32> to vector<4x16x1xf32>
    %30 = vector.broadcast %29 : vector<4x16x1xf32> to vector<4x16x16xf32>
    %31 = arith.divf %27, %30 : vector<4x16x16xf32>
    "tpu.trace_start"() <{level = 10 : i32, message = "bqk,bkd->bqd"}> : () -> ()
    %cst_20 = arith.constant dense<0.000000e+00> : vector<4x16x4xf32>
    %32 = tpu.matmul %31, %19, %cst_20 {dimension_numbers = #tpu.dot_dimension_numbers<[2], [1], [1], [2], [0, 0, 0, 1, 1, 2], [0], [0]>} : vector<4x16x16xf32>, vector<4x16x4xf32>, vector<4x16x4xf32> -> vector<4x16x4xf32>
    "tpu.trace_stop"() : () -> ()
    %c0_21 = arith.constant 0 : index
    %c0_22 = arith.constant 0 : index
    %c0_23 = arith.constant 0 : index
    %33 = vector.load %arg7[%c0_21, %c0_22, %c0_23] : memref<4x16x4xf32, #tpu.memory_space<vmem>>, vector<4x16x4xf32>
    tpu.vector_store %arg7[%c0_21, %c0_22, %c0_23], %32 {strides = array<i32>} : memref<4x16x4xf32, #tpu.memory_space<vmem>>, vector<4x16x4xf32>,
    return
  }
}

</mosaic_0001>

<llo_original>
// kernel: tpu_custom_call.1
$region0: #{tpu_custom_call.1}
  #allocation0 [shape = 'u32[]', space=smem, size = 0x4, offset = 0x4, fixed_abs, tag = 'smem constant byte address 0x4 - core index']
  #allocation1 [shape = 'u32[72,128]{1,0:T(1,128)}', space=vmem, size = 0x9000, scoped, tag = 'internal scratch']
  %s0 = inlined_call_operand.vmem [shape: f32[4,16,32], index: 0, kind: input, shape index: {}]
  %s1 = inlined_call_operand.vmem [shape: f32[32,4], index: 1, kind: input, shape index: {}]
  %s2 = inlined_call_operand.vmem [shape: f32[32,4], index: 2, kind: input, shape index: {}]
  %s3 = inlined_call_operand.vmem [shape: f32[32,4], index: 3, kind: input, shape index: {}]
  %s4 = inlined_call_operand.vmem [shape: f32[1,4], index: 4, kind: input, shape index: {}]
  %s5 = inlined_call_operand.vmem [shape: f32[1,4], index: 5, kind: input, shape index: {}]
  %s6 = inlined_call_operand.vmem [shape: f32[1,4], index: 6, kind: input, shape index: {}]
  %s7 = inlined_call_operand.vmem [shape: f32[4,16,4], index: 7, kind: output, shape index: {}]
  %s8 = sld [smem:[#allocation0]]
  $region38: #{tpu_custom_call.1} parent=0
    _
  %s10 = ssub.s32 1, %s8
  %s11 = scalar_select 0, %s10, %s8
  // Predicated region
  $region2: #{tpu_custom_call.1} parent=0 // pred_check
    _
  $region3: #{tpu_custom_call.1} parent=0 // pred_check_branch
    %13 = sbr.rel (0) target = $region5
  $region4: #{tpu_custom_call.1} parent=0 // pred_region
    _
  $region5: #{tpu_custom_call.1} parent=0 // pred_fallthru
    _
  // Predicated region
  $region6: #{tpu_custom_call.1} parent=0 // pred_check
    _
  $region7: #{tpu_custom_call.1} parent=0 // pred_check_branch
    %15 = sbr.rel (0) target = $region9
  $region8: #{tpu_custom_call.1} parent=0 // pred_region
    _
  $region9: #{tpu_custom_call.1} parent=0 // pred_fallthru
    _
  // Predicated region
  $region10: #{tpu_custom_call.1} parent=0 // pred_check
    _
  $region11: #{tpu_custom_call.1} parent=0 // pred_check_branch
    %17 = sbr.rel (0) target = $region13
  $region12: #{tpu_custom_call.1} parent=0 // pred_region
    _
  $region13: #{tpu_custom_call.1} parent=0 // pred_fallthru
    _
  // Predicated region
  $region14: #{tpu_custom_call.1} parent=0 // pred_check
    _
  $region15: #{tpu_custom_call.1} parent=0 // pred_check_branch
    %19 = sbr.rel (0) target = $region17
  $region16: #{tpu_custom_call.1} parent=0 // pred_region
    _
  $region17: #{tpu_custom_call.1} parent=0 // pred_fallthru
    _
  // Predicated region
  $region18: #{tpu_custom_call.1} parent=0 // pred_check
    _
  $region19: #{tpu_custom_call.1} parent=0 // pred_check_branch
    %21 = sbr.rel (0) target = $region21
  $region20: #{tpu_custom_call.1} parent=0 // pred_region
    _
  $region21: #{tpu_custom_call.1} parent=0 // pred_fallthru
    _
  // Predicated region
  $region22: #{tpu_custom_call.1} parent=0 // pred_check
    _
  $region23: #{tpu_custom_call.1} parent=0 // pred_check_branch
    %23 = sbr.rel (0) target = $region25
  $region24: #{tpu_custom_call.1} parent=0 // pred_region
    _
  $region25: #{tpu_custom_call.1} parent=0 // pred_fallthru
    _
  // Predicated region
  $region26: #{tpu_custom_call.1} parent=0 // pred_check
    _
  $region27: #{tpu_custom_call.1} parent=0 // pred_check_branch
    %25 = sbr.rel (0) target = $region29
  $region28: #{tpu_custom_call.1} parent=0 // pred_region
    _
  $region29: #{tpu_custom_call.1} parent=0 // pred_fallthru
    _
  %v26 = vld [vmem:[%s0] sm:$0xff]
  %v27 = vld [vmem:[%s0 + $0x8] sm:$0xff]
  %v28 = vld [vmem:[%s0 + $0x10] sm:$0xff]
  %v29 = vld [vmem:[%s0 + $0x18] sm:$0xff]
  %v30 = vld [vmem:[%s0 + $0x20] sm:$0xff]
  %v31 = vld [vmem:[%s0 + $0x28] sm:$0xff]
  %v32 = vld [vmem:[%s0 + $0x30] sm:$0xff]
  %v33 = vld [vmem:[%s0 + $0x38] sm:$0xff]
  %v34 = vld [vmem:[%s1] sm:$0xff]
  %v35 = vld [vmem:[%s1 + $0x8] sm:$0xff]
  %v36 = vld [vmem:[%s1 + $0x10] sm:$0xff]
  %v37 = vld [vmem:[%s1 + $0x18] sm:$0xff]
  %v38 = vld [vmem:[%s4] sm:$0x1]
  %v40 = vperm.slane %v38, 0
  %vm42 = vcmask 261120
  %v44 = vsel %vm42, %v26, 0
  %v47 = vsel %vm42, %v27, 0
  %v50 = vsel %vm42, %v28, 0
  %v53 = vsel %vm42, %v29, 0
  %v56 = vsel %vm42, %v30, 0
  %v59 = vsel %vm42, %v31, 0
  %v62 = vsel %vm42, %v32, 0
  %v65 = vsel %vm42, %v33, 0
  %67 = vmatpush.msra.mxu0 0.0
  %68 = vmatpush.msra.mxu0 0.0
  %69 = vmatpush.msra.mxu0 0.0
  %70 = vmatpush.msra.mxu0 0.0
  %71 = vmatpush.msra.mxu0 0.0
  %72 = vmatpush.msra.mxu0 0.0
  %73 = vmatpush.msra.mxu0 0.0
  %74 = vmatpush.msra.mxu0 0.0
  %75 = vmatpush.msra.mxu0 0.0
  %76 = vmatpush.msra.mxu0 0.0
  %77 = vmatpush.msra.mxu0 0.0
  %78 = vmatpush.msra.mxu0 0.0
  %79 = vmatpush.msra.mxu0 %v37
  %80 = vmatpush.msra.mxu0 %v36
  %81 = vmatpush.msra.mxu0 %v35
  %82 = vmatpush.msra.mxu0 %v34
  %83 = vmatmul.f32.gmra.mxu0 %v44
  %v84 = vpop.f32.mrf.mxu0
  %v85 = vadd.f32 %v40, %v84
  %86 = vmatmul.f32.gmra.mxu0 %v47
  %v87 = vpop.f32.mrf.mxu0
  %v88 = vadd.f32 %v40, %v87
  %89 = vmatmul.f32.gmra.mxu0 %v50
  %v90 = vpop.f32.mrf.mxu0
  %v91 = vadd.f32 %v40, %v90
  %92 = vmatmul.f32.gmra.mxu0 %v53
  %v93 = vpop.f32.mrf.mxu0
  %v94 = vadd.f32 %v40, %v93
  %95 = vmatmul.f32.gmra.mxu0 %v56
  %v96 = vpop.f32.mrf.mxu0
  %v97 = vadd.f32 %v40, %v96
  %98 = vmatmul.f32.gmra.mxu0 %v59
  %v99 = vpop.f32.mrf.mxu0
  %v100 = vadd.f32 %v40, %v99
  %101 = vmatmul.f32.gmra.mxu0 %v62
  %v102 = vpop.f32.mrf.mxu0
  %v103 = vadd.f32 %v40, %v102
  %104 = vmatmul.f32.gmra.mxu0 %v65
  %v105 = vpop.f32.mrf.mxu0
  %v106 = vadd.f32 %v40, %v105
  %107 = vdwg.mxu0
  %v108 = vld [vmem:[%s2] sm:$0xff]
  %v109 = vld [vmem:[%s2 + $0x8] sm:$0xff]
  %v110 = vld [vmem:[%s2 + $0x10] sm:$0xff]
  %v111 = vld [vmem:[%s2 + $0x18] sm:$0xff]
  %v112 = vld [vmem:[%s5] sm:$0x1]
  %v114 = vperm.slane %v112, 0
  %116 = vmatpush.msra.mxu0 0.0
  %117 = vmatpush.msra.mxu0 0.0
  %118 = vmatpush.msra.mxu0 0.0
  %119 = vmatpush.msra.mxu0 0.0
  %120 = vmatpush.msra.mxu0 0.0
  %121 = vmatpush.msra.mxu0 0.0
  %122 = vmatpush.msra.mxu0 0.0
  %123 = vmatpush.msra.mxu0 0.0
  %124 = vmatpush.msra.mxu0 0.0
  %125 = vmatpush.msra.mxu0 0.0
  %126 = vmatpush.msra.mxu0 0.0
  %127 = vmatpush.msra.mxu0 0.0
  %128 = vmatpush.msra.mxu0 %v111
  %129 = vmatpush.msra.mxu0 %v110
  %130 = vmatpush.msra.mxu0 %v109
  %131 = vmatpush.msra.mxu0 %v108
  %132 = vmatmul.f32.gmra.mxu0 %v44
  %v133 = vpop.f32.mrf.mxu0
  %v134 = vadd.f32 %v114, %v133
  %135 = vmatmul.f32.gmra.mxu0 %v47
  %v136 = vpop.f32.mrf.mxu0
  %v137 = vadd.f32 %v114, %v136
  %138 = vmatmul.f32.gmra.mxu0 %v50
  %v139 = vpop.f32.mrf.mxu0
  %v140 = vadd.f32 %v114, %v139
  %141 = vmatmul.f32.gmra.mxu0 %v53
  %v142 = vpop.f32.mrf.mxu0
  %v143 = vadd.f32 %v114, %v142
  %144 = vmatmul.f32.gmra.mxu0 %v56
  %v145 = vpop.f32.mrf.mxu0
  %v146 = vadd.f32 %v114, %v145
  %147 = vmatmul.f32.gmra.mxu0 %v59
  %v148 = vpop.f32.mrf.mxu0
  %v149 = vadd.f32 %v114, %v148
  %150 = vmatmul.f32.gmra.mxu0 %v62
  %v151 = vpop.f32.mrf.mxu0
  %v152 = vadd.f32 %v114, %v151
  %153 = vmatmul.f32.gmra.mxu0 %v65
  %v154 = vpop.f32.mrf.mxu0
  %v155 = vadd.f32 %v114, %v154
  %156 = vdwg.mxu0
  %v157 = vld [vmem:[%s3] sm:$0xff]
  %v158 = vld [vmem:[%s3 + $0x8] sm:$0xff]
  %v159 = vld [vmem:[%s3 + $0x10] sm:$0xff]
  %v160 = vld [vmem:[%s3 + $0x18] sm:$0xff]
  %v161 = vld [vmem:[%s6] sm:$0x1]
  %v163 = vperm.slane %v161, 0
  %165 = vmatpush.msra.mxu0 0.0
  %166 = vmatpush.msra.mxu0 0.0
  %167 = vmatpush.msra.mxu0 0.0
  %168 = vmatpush.msra.mxu0 0.0
  %169 = vmatpush.msra.mxu0 0.0
  %170 = vmatpush.msra.mxu0 0.0
  %171 = vmatpush.msra.mxu0 0.0
  %172 = vmatpush.msra.mxu0 0.0
  %173 = vmatpush.msra.mxu0 0.0
  %174 = vmatpush.msra.mxu0 0.0
  %175 = vmatpush.msra.mxu0 0.0
  %176 = vmatpush.msra.mxu0 0.0
  %177 = vmatpush.msra.mxu0 %v160
  %178 = vmatpush.msra.mxu0 %v159
  %179 = vmatpush.msra.mxu0 %v158
  %180 = vmatpush.msra.mxu0 %v157
  %181 = vmatmul.f32.gmra.mxu0 %v44
  %v182 = vpop.f32.mrf.mxu0
  %v183 = vadd.f32 %v163, %v182
  %184 = vmatmul.f32.gmra.mxu0 %v47
  %v185 = vpop.f32.mrf.mxu0
  %v186 = vadd.f32 %v163, %v185
  %187 = vmatmul.f32.gmra.mxu0 %v50
  %v188 = vpop.f32.mrf.mxu0
  %v189 = vadd.f32 %v163, %v188
  %190 = vmatmul.f32.gmra.mxu0 %v53
  %v191 = vpop.f32.mrf.mxu0
  %v192 = vadd.f32 %v163, %v191
  %193 = vmatmul.f32.gmra.mxu0 %v56
  %v194 = vpop.f32.mrf.mxu0
  %v195 = vadd.f32 %v163, %v194
  %196 = vmatmul.f32.gmra.mxu0 %v59
  %v197 = vpop.f32.mrf.mxu0
  %v198 = vadd.f32 %v163, %v197
  %199 = vmatmul.f32.gmra.mxu0 %v62
  %v200 = vpop.f32.mrf.mxu0
  %v201 = vadd.f32 %v163, %v200
  %202 = vmatmul.f32.gmra.mxu0 %v65
  %v203 = vpop.f32.mrf.mxu0
  %v204 = vadd.f32 %v163, %v203
  %205 = vdwg.mxu0
  %vm206 = vcmask 31744
  %v208 = vsel %vm206, %v85, 0
  %v211 = vsel %vm206, %v88, 0
  %v214 = vsel %vm206, %v134, 0
  %v217 = vsel %vm206, %v137, 0
  %219 = vmatpush.xpose.msra.mxu0 0.0
  %220 = vmatpush.xpose.msra.mxu0 0.0
  %221 = vmatpush.xpose.msra.mxu0 0.0
  %222 = vmatpush.xpose.msra.mxu0 0.0
  %223 = vmatpush.xpose.msra.mxu0 0.0
  %224 = vmatpush.xpose.msra.mxu0 0.0
  %225 = vmatpush.xpose.msra.mxu0 0.0
  %226 = vmatpush.xpose.msra.mxu0 0.0
  %227 = vmatpush.xpose.msra.mxu0 0.0
  %228 = vmatpush.xpose.msra.mxu0 0.0
  %229 = vmatpush.xpose.msra.mxu0 0.0
  %230 = vmatpush.xpose.msra.mxu0 0.0
  %231 = vmatpush.xpose.msra.mxu0 0.0
  %232 = vmatpush.xpose.msra.mxu0 0.0
  %233 = vmatpush.xpose.msra.mxu0 %v217
  %234 = vmatpush.xpose.msra.mxu0 %v214
  %235 = vmatmul.f32.gmra.mxu0 %v208
  %v236 = vpop.f32.mrf.mxu0
  %v237 = vadd.f32 0.0, %v236
  %238 = vmatmul.f32.gmra.mxu0 %v211
  %v239 = vpop.f32.mrf.mxu0
  %v240 = vadd.f32 0.0, %v239
  %241 = vdwg.mxu0
  %v243 = vsel %vm206, %v91, 0
  %v246 = vsel %vm206, %v94, 0
  %v249 = vsel %vm206, %v140, 0
  %v252 = vsel %vm206, %v143, 0
  %254 = vmatpush.xpose.msra.mxu0 0.0
  %255 = vmatpush.xpose.msra.mxu0 0.0
  %256 = vmatpush.xpose.msra.mxu0 0.0
  %257 = vmatpush.xpose.msra.mxu0 0.0
  %258 = vmatpush.xpose.msra.mxu0 0.0
  %259 = vmatpush.xpose.msra.mxu0 0.0
  %260 = vmatpush.xpose.msra.mxu0 0.0
  %261 = vmatpush.xpose.msra.mxu0 0.0
  %262 = vmatpush.xpose.msra.mxu0 0.0
  %263 = vmatpush.xpose.msra.mxu0 0.0
  %264 = vmatpush.xpose.msra.mxu0 0.0
  %265 = vmatpush.xpose.msra.mxu0 0.0
  %266 = vmatpush.xpose.msra.mxu0 0.0
  %267 = vmatpush.xpose.msra.mxu0 0.0
  %268 = vmatpush.xpose.msra.mxu0 %v252
  %269 = vmatpush.xpose.msra.mxu0 %v249
  %270 = vmatmul.f32.gmra.mxu0 %v243
  %v271 = vpop.f32.mrf.mxu0
  %v272 = vadd.f32 0.0, %v271
  %273 = vmatmul.f32.gmra.mxu0 %v246
  %v274 = vpop.f32.mrf.mxu0
  %v275 = vadd.f32 0.0, %v274
  %276 = vdwg.mxu0
  %v278 = vsel %vm206, %v97, 0
  %v281 = vsel %vm206, %v100, 0
  %v284 = vsel %vm206, %v146, 0
  %v287 = vsel %vm206, %v149, 0
  %289 = vmatpush.xpose.msra.mxu0 0.0
  %290 = vmatpush.xpose.msra.mxu0 0.0
  %291 = vmatpush.xpose.msra.mxu0 0.0
  %292 = vmatpush.xpose.msra.mxu0 0.0
  %293 = vmatpush.xpose.msra.mxu0 0.0
  %294 = vmatpush.xpose.msra.mxu0 0.0
  %295 = vmatpush.xpose.msra.mxu0 0.0
  %296 = vmatpush.xpose.msra.mxu0 0.0
  %297 = vmatpush.xpose.msra.mxu0 0.0
  %298 = vmatpush.xpose.msra.mxu0 0.0
  %299 = vmatpush.xpose.msra.mxu0 0.0
  %300 = vmatpush.xpose.msra.mxu0 0.0
  %301 = vmatpush.xpose.msra.mxu0 0.0
  %302 = vmatpush.xpose.msra.mxu0 0.0
  %303 = vmatpush.xpose.msra.mxu0 %v287
  %304 = vmatpush.xpose.msra.mxu0 %v284
  %305 = vmatmul.f32.gmra.mxu0 %v278
  %v306 = vpop.f32.mrf.mxu0
  %v307 = vadd.f32 0.0, %v306
  %308 = vmatmul.f32.gmra.mxu0 %v281
  %v309 = vpop.f32.mrf.mxu0
  %v310 = vadd.f32 0.0, %v309
  %311 = vdwg.mxu0
  %v313 = vsel %vm206, %v103, 0
  %v316 = vsel %vm206, %v106, 0
  %v319 = vsel %vm206, %v152, 0
  %v322 = vsel %vm206, %v155, 0
  %324 = vmatpush.xpose.msra.mxu0 0.0
  %325 = vmatpush.xpose.msra.mxu0 0.0
  %326 = vmatpush.xpose.msra.mxu0 0.0
  %327 = vmatpush.xpose.msra.mxu0 0.0
  %328 = vmatpush.xpose.msra.mxu0 0.0
  %329 = vmatpush.xpose.msra.mxu0 0.0
  %330 = vmatpush.xpose.msra.mxu0 0.0
  %331 = vmatpush.xpose.msra.mxu0 0.0
  %332 = vmatpush.xpose.msra.mxu0 0.0
  %333 = vmatpush.xpose.msra.mxu0 0.0
  %334 = vmatpush.xpose.msra.mxu0 0.0
  %335 = vmatpush.xpose.msra.mxu0 0.0
  %336 = vmatpush.xpose.msra.mxu0 0.0
  %337 = vmatpush.xpose.msra.mxu0 0.0
  %338 = vmatpush.xpose.msra.mxu0 %v322
  %339 = vmatpush.xpose.msra.mxu0 %v319
  %340 = vmatmul.f32.gmra.mxu0 %v313
  %v341 = vpop.f32.mrf.mxu0
  %v342 = vadd.f32 0.0, %v341
  %343 = vmatmul.f32.gmra.mxu0 %v316
  %v344 = vpop.f32.mrf.mxu0
  %v345 = vadd.f32 0.0, %v344
  %346 = vdwg.mxu0
  %v347 = vmul.f32 %v237, 0.17677669
  %v348 = vmul.f32 %v240, 0.17677669
  %v349 = vmul.f32 %v272, 0.17677669
  %v350 = vmul.f32 %v275, 0.17677669
  %v351 = vmul.f32 %v307, 0.17677669
  %v352 = vmul.f32 %v310, 0.17677669
  %v353 = vmul.f32 %v342, 0.17677669
  %v354 = vmul.f32 %v345, 0.17677669
  %vm355 = vcmask 130048
  %v356 = vsel %vm355, %v347, -inf
  %357 = vmax.xlane.f32.xlu0 %v356
  %v358 = vpop.xlane.xlu0 %357
  %v359 = vsel %vm355, %v348, -inf
  %360 = vmax.xlane.f32.xlu0 %v359
  %v361 = vpop.xlane.xlu0 %360
  %v362 = vsel %vm355, %v349, -inf
  %363 = vmax.xlane.f32.xlu0 %v362
  %v364 = vpop.xlane.xlu0 %363
  %v365 = vsel %vm355, %v350, -inf
  %366 = vmax.xlane.f32.xlu0 %v365
  %v367 = vpop.xlane.xlu0 %366
  %v368 = vsel %vm355, %v351, -inf
  %369 = vmax.xlane.f32.xlu0 %v368
  %v370 = vpop.xlane.xlu0 %369
  %v371 = vsel %vm355, %v352, -inf
  %372 = vmax.xlane.f32.xlu0 %v371
  %v373 = vpop.xlane.xlu0 %372
  %v374 = vsel %vm355, %v353, -inf
  %375 = vmax.xlane.f32.xlu0 %v374
  %v376 = vpop.xlane.xlu0 %375
  %v377 = vsel %vm355, %v354, -inf
  %378 = vmax.xlane.f32.xlu0 %v377
  %v379 = vpop.xlane.xlu0 %378
  %v380 = vsub.f32 %v347, %v358
  %v381 = vsub.f32 %v348, %v361
  %v382 = vsub.f32 %v349, %v364
  %v383 = vsub.f32 %v350, %v367
  %v384 = vsub.f32 %v351, %v370
  %v385 = vsub.f32 %v352, %v373
  %v386 = vsub.f32 %v353, %v376
  %v387 = vsub.f32 %v354, %v379
  %v388 = vmul.f32 %v380, 1.442695
  %v389 = vpow.pop %v388
  %v390 = vmul.f32 %v381, 1.442695
  %v391 = vpow.pop %v390
  %v392 = vmul.f32 %v382, 1.442695
  %v393 = vpow.pop %v392
  %v394 = vmul.f32 %v383, 1.442695
  %v395 = vpow.pop %v394
  %v396 = vmul.f32 %v384, 1.442695
  %v397 = vpow.pop %v396
  %v398 = vmul.f32 %v385, 1.442695
  %v399 = vpow.pop %v398
  %v400 = vmul.f32 %v386, 1.442695
  %v401 = vpow.pop %v400
  %v402 = vmul.f32 %v387, 1.442695
  %v403 = vpow.pop %v402
  %v404 = vsel %vm355, %v389, 0.0
  %405 = vadd.xlane.f32.xlu0 %v404
  %v406 = vpop.xlane.xlu0 %405
  %v407 = vsel %vm355, %v391, 0.0
  %408 = vadd.xlane.f32.xlu0 %v407
  %v409 = vpop.xlane.xlu0 %408
  %v410 = vsel %vm355, %v393, 0.0
  %411 = vadd.xlane.f32.xlu0 %v410
  %v412 = vpop.xlane.xlu0 %411
  %v413 = vsel %vm355, %v395, 0.0
  %414 = vadd.xlane.f32.xlu0 %v413
  %v415 = vpop.xlane.xlu0 %414
  %v416 = vsel %vm355, %v397, 0.0
  %417 = vadd.xlane.f32.xlu0 %v416
  %v418 = vpop.xlane.xlu0 %417
  %v419 = vsel %vm355, %v399, 0.0
  %420 = vadd.xlane.f32.xlu0 %v419
  %v421 = vpop.xlane.xlu0 %420
  %v422 = vsel %vm355, %v401, 0.0
  %423 = vadd.xlane.f32.xlu0 %v422
  %v424 = vpop.xlane.xlu0 %423
  %v425 = vsel %vm355, %v403, 0.0
  %426 = vadd.xlane.f32.xlu0 %v425
  %v427 = vpop.xlane.xlu0 %426
  %v428 = vrcp.pop %v406
  %v429 = vmul.f32 %v406, %v428
  %v430 = vsub.f32 1.0, %v429
  %v431 = vmul.f32 %v428, %v430
  %v432 = vadd.f32 %v428, %v431
  %vm433 = vweird.f32 %v406
  %vm434 = vweird.f32 %v428
  %vm435 = vmor %vm433, %vm434
  %v436 = vsel %vm435, %v428, %v432
  %v437 = vand.u32 2147483647, %v406
  %vm438 = vcmp.eq.f32.partialorder %v437, 8.507059e+37
  %v439 = vand.u32 %v406, 2147483648
  %v440 = vor.u32 1.1754944e-38, %v439
  %v441 = vsel %vm438, %v440, %v436
  %v442 = vmul.f32 %v389, %v441
  %v443 = vrcp.pop %v409
  %v444 = vmul.f32 %v409, %v443
  %v445 = vsub.f32 1.0, %v444
  %v446 = vmul.f32 %v443, %v445
  %v447 = vadd.f32 %v443, %v446
  %vm448 = vweird.f32 %v409
  %vm449 = vweird.f32 %v443
  %vm450 = vmor %vm448, %vm449
  %v451 = vsel %vm450, %v443, %v447
  %v452 = vand.u32 2147483647, %v409
  %vm453 = vcmp.eq.f32.partialorder %v452, 8.507059e+37
  %v454 = vand.u32 %v409, 2147483648
  %v455 = vor.u32 1.1754944e-38, %v454
  %v456 = vsel %vm453, %v455, %v451
  %v457 = vmul.f32 %v391, %v456
  %v458 = vrcp.pop %v412
  %v459 = vmul.f32 %v412, %v458
  %v460 = vsub.f32 1.0, %v459
  %v461 = vmul.f32 %v458, %v460
  %v462 = vadd.f32 %v458, %v461
  %vm463 = vweird.f32 %v412
  %vm464 = vweird.f32 %v458
  %vm465 = vmor %vm463, %vm464
  %v466 = vsel %vm465, %v458, %v462
  %v467 = vand.u32 2147483647, %v412
  %vm468 = vcmp.eq.f32.partialorder %v467, 8.507059e+37
  %v469 = vand.u32 %v412, 2147483648
  %v470 = vor.u32 1.1754944e-38, %v469
  %v471 = vsel %vm468, %v470, %v466
  %v472 = vmul.f32 %v393, %v471
  %v473 = vrcp.pop %v415
  %v474 = vmul.f32 %v415, %v473
  %v475 = vsub.f32 1.0, %v474
  %v476 = vmul.f32 %v473, %v475
  %v477 = vadd.f32 %v473, %v476
  %vm478 = vweird.f32 %v415
  %vm479 = vweird.f32 %v473
  %vm480 = vmor %vm478, %vm479
  %v481 = vsel %vm480, %v473, %v477
  %v482 = vand.u32 2147483647, %v415
  %vm483 = vcmp.eq.f32.partialorder %v482, 8.507059e+37
  %v484 = vand.u32 %v415, 2147483648
  %v485 = vor.u32 1.1754944e-38, %v484
  %v486 = vsel %vm483, %v485, %v481
  %v487 = vmul.f32 %v395, %v486
  %v488 = vrcp.pop %v418
  %v489 = vmul.f32 %v418, %v488
  %v490 = vsub.f32 1.0, %v489
  %v491 = vmul.f32 %v488, %v490
  %v492 = vadd.f32 %v488, %v491
  %vm493 = vweird.f32 %v418
  %vm494 = vweird.f32 %v488
  %vm495 = vmor %vm493, %vm494
  %v496 = vsel %vm495, %v488, %v492
  %v497 = vand.u32 2147483647, %v418
  %vm498 = vcmp.eq.f32.partialorder %v497, 8.507059e+37
  %v499 = vand.u32 %v418, 2147483648
  %v500 = vor.u32 1.1754944e-38, %v499
  %v501 = vsel %vm498, %v500, %v496
  %v502 = vmul.f32 %v397, %v501
  %v503 = vrcp.pop %v421
  %v504 = vmul.f32 %v421, %v503
  %v505 = vsub.f32 1.0, %v504
  %v506 = vmul.f32 %v503, %v505
  %v507 = vadd.f32 %v503, %v506
  %vm508 = vweird.f32 %v421
  %vm509 = vweird.f32 %v503
  %vm510 = vmor %vm508, %vm509
  %v511 = vsel %vm510, %v503, %v507
  %v512 = vand.u32 2147483647, %v421
  %vm513 = vcmp.eq.f32.partialorder %v512, 8.507059e+37
  %v514 = vand.u32 %v421, 2147483648
  %v515 = vor.u32 1.1754944e-38, %v514
  %v516 = vsel %vm513, %v515, %v511
  %v517 = vmul.f32 %v399, %v516
  %v518 = vrcp.pop %v424
  %v519 = vmul.f32 %v424, %v518
  %v520 = vsub.f32 1.0, %v519
  %v521 = vmul.f32 %v518, %v520
  %v522 = vadd.f32 %v518, %v521
  %vm523 = vweird.f32 %v424
  %vm524 = vweird.f32 %v518
  %vm525 = vmor %vm523, %vm524
  %v526 = vsel %vm525, %v518, %v522
  %v527 = vand.u32 2147483647, %v424
  %vm528 = vcmp.eq.f32.partialorder %v527, 8.507059e+37
  %v529 = vand.u32 %v424, 2147483648
  %v530 = vor.u32 1.1754944e-38, %v529
  %v531 = vsel %vm528, %v530, %v526
  %v532 = vmul.f32 %v401, %v531
  %v533 = vrcp.pop %v427
  %v534 = vmul.f32 %v427, %v533
  %v535 = vsub.f32 1.0, %v534
  %v536 = vmul.f32 %v533, %v535
  %v537 = vadd.f32 %v533, %v536
  %vm538 = vweird.f32 %v427
  %vm539 = vweird.f32 %v533
  %vm540 = vmor %vm538, %vm539
  %v541 = vsel %vm540, %v533, %v537
  %v542 = vand.u32 2147483647, %v427
  %vm543 = vcmp.eq.f32.partialorder %v542, 8.507059e+37
  %v544 = vand.u32 %v427, 2147483648
  %v545 = vor.u32 1.1754944e-38, %v544
  %v546 = vsel %vm543, %v545, %v541
  %v547 = vmul.f32 %v403, %v546
  %v549 = vsel %vm355, %v442, 0
  %v552 = vsel %vm355, %v457, 0
  %554 = vmatpush.msra.mxu0 0.0
  %555 = vmatpush.msra.mxu0 0.0
  %556 = vmatpush.msra.mxu0 0.0
  %557 = vmatpush.msra.mxu0 0.0
  %558 = vmatpush.msra.mxu0 0.0
  %559 = vmatpush.msra.mxu0 0.0
  %560 = vmatpush.msra.mxu0 0.0
  %561 = vmatpush.msra.mxu0 0.0
  %562 = vmatpush.msra.mxu0 0.0
  %563 = vmatpush.msra.mxu0 0.0
  %564 = vmatpush.msra.mxu0 0.0
  %565 = vmatpush.msra.mxu0 0.0
  %566 = vmatpush.msra.mxu0 0.0
  %567 = vmatpush.msra.mxu0 0.0
  %568 = vmatpush.msra.mxu0 %v186
  %569 = vmatpush.msra.mxu0 %v183
  %570 = vmatmul.f32.gmra.mxu0 %v549
  %v571 = vpop.f32.mrf.mxu0
  %v572 = vadd.f32 0.0, %v571
  %573 = vmatmul.f32.gmra.mxu0 %v552
  %v574 = vpop.f32.mrf.mxu0
  %v575 = vadd.f32 0.0, %v574
  %576 = vdwg.mxu0
  %v578 = vsel %vm355, %v472, 0
  %v581 = vsel %vm355, %v487, 0
  %583 = vmatpush.msra.mxu0 0.0
  %584 = vmatpush.msra.mxu0 0.0
  %585 = vmatpush.msra.mxu0 0.0
  %586 = vmatpush.msra.mxu0 0.0
  %587 = vmatpush.msra.mxu0 0.0
  %588 = vmatpush.msra.mxu0 0.0
  %589 = vmatpush.msra.mxu0 0.0
  %590 = vmatpush.msra.mxu0 0.0
  %591 = vmatpush.msra.mxu0 0.0
  %592 = vmatpush.msra.mxu0 0.0
  %593 = vmatpush.msra.mxu0 0.0
  %594 = vmatpush.msra.mxu0 0.0
  %595 = vmatpush.msra.mxu0 0.0
  %596 = vmatpush.msra.mxu0 0.0
  %597 = vmatpush.msra.mxu0 %v192
  %598 = vmatpush.msra.mxu0 %v189
  %599 = vmatmul.f32.gmra.mxu0 %v578
  %v600 = vpop.f32.mrf.mxu0
  %v601 = vadd.f32 0.0, %v600
  %602 = vmatmul.f32.gmra.mxu0 %v581
  %v603 = vpop.f32.mrf.mxu0
  %v604 = vadd.f32 0.0, %v603
  %605 = vdwg.mxu0
  %v607 = vsel %vm355, %v502, 0
  %v610 = vsel %vm355, %v517, 0
  %612 = vmatpush.msra.mxu0 0.0
  %613 = vmatpush.msra.mxu0 0.0
  %614 = vmatpush.msra.mxu0 0.0
  %615 = vmatpush.msra.mxu0 0.0
  %616 = vmatpush.msra.mxu0 0.0
  %617 = vmatpush.msra.mxu0 0.0
  %618 = vmatpush.msra.mxu0 0.0
  %619 = vmatpush.msra.mxu0 0.0
  %620 = vmatpush.msra.mxu0 0.0
  %621 = vmatpush.msra.mxu0 0.0
  %622 = vmatpush.msra.mxu0 0.0
  %623 = vmatpush.msra.mxu0 0.0
  %624 = vmatpush.msra.mxu0 0.0
  %625 = vmatpush.msra.mxu0 0.0
  %626 = vmatpush.msra.mxu0 %v198
  %627 = vmatpush.msra.mxu0 %v195
  %628 = vmatmul.f32.gmra.mxu0 %v607
  %v629 = vpop.f32.mrf.mxu0
  %v630 = vadd.f32 0.0, %v629
  %631 = vmatmul.f32.gmra.mxu0 %v610
  %v632 = vpop.f32.mrf.mxu0
  %v633 = vadd.f32 0.0, %v632
  %634 = vdwg.mxu0
  %v636 = vsel %vm355, %v532, 0
  %v639 = vsel %vm355, %v547, 0
  %641 = vmatpush.msra.mxu0 0.0
  %642 = vmatpush.msra.mxu0 0.0
  %643 = vmatpush.msra.mxu0 0.0
  %644 = vmatpush.msra.mxu0 0.0
  %645 = vmatpush.msra.mxu0 0.0
  %646 = vmatpush.msra.mxu0 0.0
  %647 = vmatpush.msra.mxu0 0.0
  %648 = vmatpush.msra.mxu0 0.0
  %649 = vmatpush.msra.mxu0 0.0
  %650 = vmatpush.msra.mxu0 0.0
  %651 = vmatpush.msra.mxu0 0.0
  %652 = vmatpush.msra.mxu0 0.0
  %653 = vmatpush.msra.mxu0 0.0
  %654 = vmatpush.msra.mxu0 0.0
  %655 = vmatpush.msra.mxu0 %v204
  %656 = vmatpush.msra.mxu0 %v201
  %657 = vmatmul.f32.gmra.mxu0 %v636
  %v658 = vpop.f32.mrf.mxu0
  %v659 = vadd.f32 0.0, %v658
  %660 = vmatmul.f32.gmra.mxu0 %v639
  %v661 = vpop.f32.mrf.mxu0
  %v662 = vadd.f32 0.0, %v661
  %663 = vdwg.mxu0
  %664 = vst.msk [vmem:[%s7] sm:$0xff] %vm206, %v572
  %665 = vst.msk [vmem:[%s7 + $0x8] sm:$0xff] %vm206, %v575
  %666 = vst.msk [vmem:[%s7 + $0x10] sm:$0xff] %vm206, %v601
  %667 = vst.msk [vmem:[%s7 + $0x18] sm:$0xff] %vm206, %v604
  %668 = vst.msk [vmem:[%s7 + $0x20] sm:$0xff] %vm206, %v630
  %669 = vst.msk [vmem:[%s7 + $0x28] sm:$0xff] %vm206, %v633
  %670 = vst.msk [vmem:[%s7 + $0x30] sm:$0xff] %vm206, %v659
  %671 = vst.msk [vmem:[%s7 + $0x38] sm:$0xff] %vm206, %v662
  // Predicated region
  $region30: #{tpu_custom_call.1} parent=0 // pred_check
    _
  $region31: #{tpu_custom_call.1} parent=0 // pred_check_branch
    %673 = sbr.rel (0) target = $region33
  $region32: #{tpu_custom_call.1} parent=0 // pred_region
    _
  $region33: #{tpu_custom_call.1} parent=0 // pred_fallthru
    _
  // Predicated region
  $region34: #{tpu_custom_call.1} parent=0 // pred_check
    _
  $region35: #{tpu_custom_call.1} parent=0 // pred_check_branch
    %675 = sbr.rel (0) target = $region37
  $region36: #{tpu_custom_call.1} parent=0 // pred_region
    _
  $region37: #{tpu_custom_call.1} parent=0 // pred_fallthru
    _

</llo_original>
